<compile_context>
chip_gen: v5e
topology: v5e:2x2
jax: 0.10.0
libtpu: 0.0.40
codegen_flags: <defaults>
</compile_context>

<pallas_src>
import jax
import jax.numpy as jnp
from jax.experimental import pallas as pl
from jax.experimental.pallas import tpu as pltpu


def _body_transfer_kernel(v_ref, w_ref, o_ref):
    # v_ref: (B*I, N)   folded vertices (full contraction axis, VMEM-resident)
    # w_ref: (tm, N)    weight tile for this grid step (f32 or bf16 on the wire)
    # o_ref: (B*I, tm)  output tile — lane axis = M tile (lane-dense stores)
    w = w_ref[...].astype(jnp.float32)  # upcast AFTER the (possibly bf16) DMA
    o_ref[...] = jax.lax.dot_general(
        v_ref[...],
        w,
        dimension_numbers=(((1,), (1,)), ((), ())),  # contract N on both sides
        preferred_element_type=jnp.float32,
    )


def _pick_tm(tm_req: int, M: int, N: int, itemsize: int, budget: int = 20 << 20) -> int:
    """Largest multiple-of-128 M tile whose double-buffered weight slab fits the budget."""
    tm_eff = max(128, (min(tm_req, M) // 128) * 128)
    while tm_eff > 128 and 2 * tm_eff * N * itemsize > budget:
        tm_eff -= 128
    return tm_eff


def body_transfer(
    vertices: jax.Array,
    weights: jax.Array,
    *,
    tm: int = 512,
    weights_dtype=None,
    force_tiled: bool = False,
) -> jax.Array:
    """out[b, m, i] = sum_n weights[m, n] * vertices[b, n, i]"""
    B, N, I = vertices.shape
    M, N_w = weights.shape
    if N != N_w:
        raise ValueError("weights second dim must match vertices' N")

    # Optional narrower weight stream (perf knob; semantics-preserving default
    # is the original f32 buffer).
    if weights_dtype is not None and weights.dtype != weights_dtype:
        weights = weights.astype(weights_dtype)

    # Fold (B, I) into one row axis so the weights contract against all
    # batches at once: v2[b*I + i, n] = vertices[b, n, i].
    v2 = jnp.transpose(vertices, (0, 2, 1)).reshape(B * I, N).astype(jnp.float32)

    w_bytes = M * N * weights.dtype.itemsize
    v_bytes = (B * I) * N * 4
    o_bytes = (B * I) * M * 4
    fits_vmem = (w_bytes + v_bytes + o_bytes) <= (12 << 20)
    use_gridless = ((not force_tiled) and fits_vmem) or (M < 128)

    if use_gridless:
        # Everything in VMEM, one matmul, no pipeline-step overhead.
        out_flat = pl.pallas_call(
            _body_transfer_kernel,
            out_shape=jax.ShapeDtypeStruct((B * I, M), jnp.float32),
        )(v2, weights)
    else:
        # M-tile grid; tm must be a multiple of 128 (output lane axis).
        tm_eff = _pick_tm(tm, M, N, weights.dtype.itemsize)
        grid = (pl.cdiv(M, tm_eff),)  # ragged last tile handled by masking
        out_flat = pl.pallas_call(
            _body_transfer_kernel,
            out_shape=jax.ShapeDtypeStruct((B * I, M), jnp.float32),
            grid_spec=pltpu.PrefetchScalarGridSpec(
                num_scalar_prefetch=0,
                grid=grid,
                in_specs=[
                    # folded vertices: constant block index -> DMA'd once, resident
                    pl.BlockSpec((B * I, N), lambda mi: (0, 0)),
                    # weights: the only heavy HBM stream, read exactly once
                    pl.BlockSpec((tm_eff, N), lambda mi: (mi, 0)),
                ],
                out_specs=pl.BlockSpec((B * I, tm_eff), lambda mi: (0, mi)),
            ),
            compiler_params=pltpu.CompilerParams(
                dimension_semantics=("parallel",),  # megacore shards M tiles
                vmem_limit_bytes=32 * 1024 * 1024,  # room for double-buffered tiles
            ),
        )(v2, weights)

    # [B*I, M] -> [B, M, I]
    return out_flat.reshape(B, I, M).transpose(0, 2, 1)


def body_transfer_ref(vertices, weights, stream_dtype=None):
    # Reference sees the same weights the kernel streams (optionally quantized),
    # so the check isolates kernel math from the documented dtype choice.
    w = weights
    if stream_dtype is not None:
        w = w.astype(stream_dtype)
    w = w.astype(jnp.float32)
    return jnp.einsum(
        "bni,mn->bmi", vertices, w, precision=jax.lax.Precision.HIGHEST
    )


if __name__ == "__main__":
    # TODO(synk): the original module loads the transfer matrix from a
    # .pkl/.npz file; here a deterministic synthetic buffer stands in for it.
    key = jax.random.PRNGKey(0)
    kv, kw, kv2, kw2 = jax.random.split(key, 4)

    # --- small demo shapes (gridless fast path, faithful f32 weights) ---
    B, N, I, M = 2, 256, 16, 128
    vertices = jax.random.normal(kv, (B, N, I), dtype=jnp.float32)
    weights = jax.random.normal(kw, (M, N), dtype=jnp.float32) * 0.05

    out = jax.block_until_ready(body_transfer(vertices, weights))
    expected = body_transfer_ref(vertices, weights)
    assert out.shape == (B, M, I)
    assert jnp.allclose(out, expected, atol=2e-2, rtol=2e-2), "gridless path mismatch"

    # --- moderately larger shapes, forcing the tiled (grid over M) path ---
    B2, N2, I2, M2 = 2, 512, 16, 1024
    vertices2 = jax.random.normal(kv2, (B2, N2, I2), dtype=jnp.float32)
    weights2 = jax.random.normal(kw2, (M2, N2), dtype=jnp.float32) * 0.05

    out2 = jax.block_until_ready(
        body_transfer(vertices2, weights2, tm=256, force_tiled=True)
    )
    expected2 = body_transfer_ref(vertices2, weights2)
    assert out2.shape == (B2, M2, I2)
    assert jnp.allclose(out2, expected2, atol=2e-2, rtol=2e-2), "tiled path mismatch"

    # --- tiled path with the optional bf16 weight stream (perf knob) ---
    out3 = jax.block_until_ready(
        body_transfer(
            vertices2, weights2, tm=256, force_tiled=True, weights_dtype=jnp.bfloat16
        )
    )
    expected3 = body_transfer_ref(vertices2, weights2, stream_dtype=jnp.bfloat16)
    assert out3.shape == (B2, M2, I2)
    assert jnp.allclose(out3, expected3, atol=2e-2, rtol=2e-2), "bf16 stream mismatch"

    print("KERNEL_OK")
</pallas_src>

<mosaic_0001>
module attributes {stable_mosaic.version = 11 : i64} {
  func.func @_body_transfer_kernel(%arg0: memref<32x256xf32, #tpu.memory_space<vmem>>, %arg1: memref<128x256xf32, #tpu.memory_space<vmem>>, %arg2: memref<32x128xf32, #tpu.memory_space<vmem>>) attributes {dimension_semantics = [], scalar_prefetch = 0 : i64, scratch_operands = 0 : i64, tpu.core_type = #tpu.core_type<tc>} {
    %c0 = arith.constant 0 : index
    %c0_0 = arith.constant 0 : index
    %0 = vector.load %arg1[%c0, %c0_0] : memref<128x256xf32, #tpu.memory_space<vmem>>, vector<128x256xf32>
    %c0_1 = arith.constant 0 : index
    %c0_2 = arith.constant 0 : index
    %1 = vector.load %arg0[%c0_1, %c0_2] : memref<32x256xf32, #tpu.memory_space<vmem>>, vector<32x256xf32>
    %cst = arith.constant dense<0.000000e+00> : vector<32x128xf32>
    %2 = tpu.matmul %1, %0, %cst {dimension_numbers = #tpu.dot_dimension_numbers<[1], [1], [0], [0], [0, 0, 1, 0], [], []>} : vector<32x256xf32>, vector<128x256xf32>, vector<32x128xf32> -> vector<32x128xf32>
    %c0_3 = arith.constant 0 : index
    %c0_4 = arith.constant 0 : index
    %3 = vector.load %arg2[%c0_3, %c0_4] : memref<32x128xf32, #tpu.memory_space<vmem>>, vector<32x128xf32>
    tpu.vector_store %arg2[%c0_3, %c0_4], %2 {strides = array<i32>} : memref<32x128xf32, #tpu.memory_space<vmem>>, vector<32x128xf32>,
    return
  }
}

</mosaic_0001>

<llo_original>
// kernel: tpu_custom_call.1
$region0: #{tpu_custom_call.1}
  #allocation0 [shape = 'u32[]', space=smem, size = 0x4, offset = 0x4, fixed_abs, tag = 'smem constant byte address 0x4 - core index']
  #allocation1 [shape = 'u32[72,128]{1,0:T(1,128)}', space=vmem, size = 0x9000, scoped, tag = 'internal scratch']
  %s0 = inlined_call_operand.hbm [shape: f32[32,256], index: 0, kind: input, shape index: {}]
  %s1 = inlined_call_operand.hbm [shape: f32[128,256], index: 1, kind: input, shape index: {}]
  %s2 = inlined_call_operand.hbm [shape: f32[32,128], index: 2, kind: output, shape index: {}]
  %s3 = sld [smem:[#allocation0]]
  $region26: #{tpu_custom_call.1} parent=0
    _
  %s5 = ssub.s32 1, %s3
  %s6 = scalar_select 0, %s5, %s3
  $region1: #{tpu_custom_call.1} parent=0
    #allocation2 [shape = 'u8[32768]{0}', space=vmem, size = 0x8000, scoped, tag = 'input window, operand 0, single buffered']
    #allocation3 [shape = 's32[1]{0}', space=sflag, size = 0x4, scoped, tag = 'scoped memory for tpu_custom_call.1']
    #allocation4 [shape = 's32[1]{0}', space=sflag, size = 0x4, scoped, tag = 'scoped memory for tpu_custom_call.1']
    #allocation5 [shape = 'u8[131072]{0}', space=vmem, size = 0x20000, scoped, tag = 'input window, operand 1, single buffered']
    #allocation6 [shape = 's32[1]{0}', space=sflag, size = 0x4, scoped, tag = 'scoped memory for tpu_custom_call.1']
    #allocation7 [shape = 'u8[16384]{0}', space=vmem, size = 0x4000, scoped, tag = 'output window, operand 0, single buffered']
    %7 = vsyncpa [#allocation3], 0
    %8 = vsyncpa [#allocation6], 0
    %9 = vsyncpa [#allocation4], 0
    // Predicated region
    $region2: #{tpu_custom_call.1} parent=1 // pred_check
      _
    $region3: #{tpu_custom_call.1} parent=1 // pred_check_branch
      %11 = sbr.rel (0) target = $region5
    $region4: #{tpu_custom_call.1} parent=1 // pred_region
      %13 = vsyncadd [#allocation3], 0
      %s14 = sshll.u32 %s0, 4
      %s15 = int_to_ptr.hbm [resolvable:$true] %s14
      %s16 = sshll.u32 [#allocation2], 4
      %s17 = int_to_ptr.vmem [resolvable:$true] %s16
      %22 = dma.hbm_to_vmem [thread:$0]  %s15, 1024, %s17, [#allocation3], 256, 256, 16
    $region5: #{tpu_custom_call.1} parent=1 // pred_fallthru
      _
    // Predicated region
    $region6: #{tpu_custom_call.1} parent=1 // pred_check
      _
    $region7: #{tpu_custom_call.1} parent=1 // pred_check_branch
      %24 = sbr.rel (0) target = $region9
    $region8: #{tpu_custom_call.1} parent=1 // pred_region
      %26 = vsyncadd [#allocation6], 0
      %s27 = sshll.u32 %s1, 4
      %s28 = int_to_ptr.hbm [resolvable:$true] %s27
      %s29 = sshll.u32 [#allocation5], 4
      %s30 = int_to_ptr.vmem [resolvable:$true] %s29
      %35 = dma.hbm_to_vmem [thread:$0]  %s28, 4096, %s30, [#allocation6], 256, 256, 16
    $region9: #{tpu_custom_call.1} parent=1 // pred_fallthru
      _
    // Predicated region
    $region10: #{tpu_custom_call.1} parent=1 // pred_check
      _
    $region11: #{tpu_custom_call.1} parent=1 // pred_check_branch
      %37 = sbr.rel (0) target = $region13
    $region12: #{tpu_custom_call.1} parent=1 // pred_region
      %39 = dma.done [#allocation3], 1024
    $region13: #{tpu_custom_call.1} parent=1 // pred_fallthru
      _
    // Predicated region
    $region14: #{tpu_custom_call.1} parent=1 // pred_check
      _
    $region15: #{tpu_custom_call.1} parent=1 // pred_check_branch
      %41 = sbr.rel (0) target = $region17
    $region16: #{tpu_custom_call.1} parent=1 // pred_region
      %43 = dma.done [#allocation6], 4096
    $region17: #{tpu_custom_call.1} parent=1 // pred_fallthru
      _
    %v44 = vld [vmem:[#allocation5] sm:$0xff]
    %v45 = vld [vmem:[#allocation5 + $0x8] sm:$0xff]
    %v46 = vld [vmem:[#allocation5 + $0x10] sm:$0xff]
    %v47 = vld [vmem:[#allocation5 + $0x18] sm:$0xff]
    %v48 = vld [vmem:[#allocation5 + $0x20] sm:$0xff]
    %v49 = vld [vmem:[#allocation5 + $0x28] sm:$0xff]
    %v50 = vld [vmem:[#allocation5 + $0x30] sm:$0xff]
    %v51 = vld [vmem:[#allocation5 + $0x38] sm:$0xff]
    %v52 = vld [vmem:[#allocation5 + $0x40] sm:$0xff]
    %v53 = vld [vmem:[#allocation5 + $0x48] sm:$0xff]
    %v54 = vld [vmem:[#allocation5 + $0x50] sm:$0xff]
    %v55 = vld [vmem:[#allocation5 + $0x58] sm:$0xff]
    %v56 = vld [vmem:[#allocation5 + $0x60] sm:$0xff]
    %v57 = vld [vmem:[#allocation5 + $0x68] sm:$0xff]
    %v58 = vld [vmem:[#allocation5 + $0x70] sm:$0xff]
    %v59 = vld [vmem:[#allocation5 + $0x78] sm:$0xff]
    %v60 = vld [vmem:[#allocation5 + $0x80] sm:$0xff]
    %v61 = vld [vmem:[#allocation5 + $0x88] sm:$0xff]
    %v62 = vld [vmem:[#allocation5 + $0x90] sm:$0xff]
    %v63 = vld [vmem:[#allocation5 + $0x98] sm:$0xff]
    %v64 = vld [vmem:[#allocation5 + $0xa0] sm:$0xff]
    %v65 = vld [vmem:[#allocation5 + $0xa8] sm:$0xff]
    %v66 = vld [vmem:[#allocation5 + $0xb0] sm:$0xff]
    %v67 = vld [vmem:[#allocation5 + $0xb8] sm:$0xff]
    %v68 = vld [vmem:[#allocation5 + $0xc0] sm:$0xff]
    %v69 = vld [vmem:[#allocation5 + $0xc8] sm:$0xff]
    %v70 = vld [vmem:[#allocation5 + $0xd0] sm:$0xff]
    %v71 = vld [vmem:[#allocation5 + $0xd8] sm:$0xff]
    %v72 = vld [vmem:[#allocation5 + $0xe0] sm:$0xff]
    %v73 = vld [vmem:[#allocation5 + $0xe8] sm:$0xff]
    %v74 = vld [vmem:[#allocation5 + $0xf0] sm:$0xff]
    %v75 = vld [vmem:[#allocation5 + $0xf8] sm:$0xff]
    %v76 = vld [vmem:[#allocation2] sm:$0xff]
    %v77 = vld [vmem:[#allocation2 + $0x8] sm:$0xff]
    %v78 = vld [vmem:[#allocation2 + $0x10] sm:$0xff]
    %v79 = vld [vmem:[#allocation2 + $0x18] sm:$0xff]
    %v80 = vld [vmem:[#allocation2 + $0x20] sm:$0xff]
    %v81 = vld [vmem:[#allocation2 + $0x28] sm:$0xff]
    %v82 = vld [vmem:[#allocation2 + $0x30] sm:$0xff]
    %v83 = vld [vmem:[#allocation2 + $0x38] sm:$0xff]
    %84 = vmatpush.xpose.msra.mxu0 %v74
    %85 = vmatpush.xpose.msra.mxu0 %v72
    %86 = vmatpush.xpose.msra.mxu0 %v70
    %87 = vmatpush.xpose.msra.mxu0 %v68
    %88 = vmatpush.xpose.msra.mxu0 %v66
    %89 = vmatpush.xpose.msra.mxu0 %v64
    %90 = vmatpush.xpose.msra.mxu0 %v62
    %91 = vmatpush.xpose.msra.mxu0 %v60
    %92 = vmatpush.xpose.msra.mxu0 %v58
    %93 = vmatpush.xpose.msra.mxu0 %v56
    %94 = vmatpush.xpose.msra.mxu0 %v54
    %95 = vmatpush.xpose.msra.mxu0 %v52
    %96 = vmatpush.xpose.msra.mxu0 %v50
    %97 = vmatpush.xpose.msra.mxu0 %v48
    %98 = vmatpush.xpose.msra.mxu0 %v46
    %99 = vmatpush.xpose.msra.mxu0 %v44
    %100 = vmatmul.f32.gmra.mxu0 %v76
    %v101 = vpop.f32.mrf.mxu0
    %v102 = vadd.f32 0.0, %v101
    %103 = vmatmul.f32.gmra.mxu0 %v78
    %v104 = vpop.f32.mrf.mxu0
    %v105 = vadd.f32 0.0, %v104
    %106 = vmatmul.f32.gmra.mxu0 %v80
    %v107 = vpop.f32.mrf.mxu0
    %v108 = vadd.f32 0.0, %v107
    %109 = vmatmul.f32.gmra.mxu0 %v82
    %v110 = vpop.f32.mrf.mxu0
    %v111 = vadd.f32 0.0, %v110
    %112 = vdwg.mxu0
    %113 = vmatpush.xpose.msra.mxu0 %v75
    %114 = vmatpush.xpose.msra.mxu0 %v73
    %115 = vmatpush.xpose.msra.mxu0 %v71
    %116 = vmatpush.xpose.msra.mxu0 %v69
    %117 = vmatpush.xpose.msra.mxu0 %v67
    %118 = vmatpush.xpose.msra.mxu0 %v65
    %119 = vmatpush.xpose.msra.mxu0 %v63
    %120 = vmatpush.xpose.msra.mxu0 %v61
    %121 = vmatpush.xpose.msra.mxu0 %v59
    %122 = vmatpush.xpose.msra.mxu0 %v57
    %123 = vmatpush.xpose.msra.mxu0 %v55
    %124 = vmatpush.xpose.msra.mxu0 %v53
    %125 = vmatpush.xpose.msra.mxu0 %v51
    %126 = vmatpush.xpose.msra.mxu0 %v49
    %127 = vmatpush.xpose.msra.mxu0 %v47
    %128 = vmatpush.xpose.msra.mxu0 %v45
    %129 = vmatmul.f32.gmra.mxu0 %v77
    %v130 = vpop.f32.mrf.mxu0
    %v131 = vadd.f32 %v102, %v130
    %132 = vmatmul.f32.gmra.mxu0 %v79
    %v133 = vpop.f32.mrf.mxu0
    %v134 = vadd.f32 %v105, %v133
    %135 = vmatmul.f32.gmra.mxu0 %v81
    %v136 = vpop.f32.mrf.mxu0
    %v137 = vadd.f32 %v108, %v136
    %138 = vmatmul.f32.gmra.mxu0 %v83
    %v139 = vpop.f32.mrf.mxu0
    %v140 = vadd.f32 %v111, %v139
    %141 = vdwg.mxu0
    %142 = vst [vmem:[#allocation7] sm:$0xff] %v131
    %143 = vst [vmem:[#allocation7 + $0x8] sm:$0xff] %v134
    %144 = vst [vmem:[#allocation7 + $0x10] sm:$0xff] %v137
    %145 = vst [vmem:[#allocation7 + $0x18] sm:$0xff] %v140
    // Predicated region
    $region18: #{tpu_custom_call.1} parent=1 // pred_check
      _
    $region19: #{tpu_custom_call.1} parent=1 // pred_check_branch
      %147 = sbr.rel (0) target = $region21
    $region20: #{tpu_custom_call.1} parent=1 // pred_region
      %149 = vsyncadd [#allocation4], 0
      %s150 = sshll.u32 [#allocation7], 4
      %s151 = int_to_ptr.vmem [resolvable:$true] %s150
      %s152 = sshll.u32 %s2, 4
      %s153 = int_to_ptr.hbm [resolvable:$true] %s152
      %158 = dma.vmem_to_hbm [thread:$0]  %s151, 512, %s153, [#allocation4], 128, 128, 8
    $region21: #{tpu_custom_call.1} parent=1 // pred_fallthru
      _
    // Predicated region
    $region22: #{tpu_custom_call.1} parent=1 // pred_check
      _
    $region23: #{tpu_custom_call.1} parent=1 // pred_check_branch
      %160 = sbr.rel (0) target = $region25
    $region24: #{tpu_custom_call.1} parent=1 // pred_region
      %162 = dma.done [#allocation4], 512
    $region25: #{tpu_custom_call.1} parent=1 // pred_fallthru
      _
    %163 = vsyncpa [#allocation3], 1
    %164 = vsyncpa [#allocation6], 1
    %165 = vsyncpa [#allocation4], 1

</llo_original>
